<compile_context>
chip_gen: v5e
topology: v5e:2x2
jax: 0.10.0
libtpu: 0.0.40
codegen_flags: <defaults>
</compile_context>

<pallas_src>
import functools
import math

import jax
import jax.numpy as jnp
from jax.experimental import pallas as pl
from jax.experimental.pallas import tpu as pltpu


def _transe_hinge_kernel(score_ref, posm_ref, out_ref, acc_ref, *,
                         compute_dtype, d_orig, B, Ks, tb, tk):
    """Per-(B-tile, K-tile) step of sum_{b,k>=1,d} max(0, pos[b,d] + margin - score[b,k,d]).

    score_ref : (tb, tk, Dl) tile of the (lane-densified) score tensor, input dtype
    posm_ref  : (tb, 1,  Dl) pre-tiled pos + margin row, compute dtype (tiny input)
    out_ref   : (1, 8, 128)  per-B-tile partial sum (scalar splat), f32
    acc_ref   : (tb, 1, Dl)  f32 running per-lane accumulator (VMEM scratch)
    """
    i = pl.program_id(0)          # batch-tile index  ("parallel"  -> megacore on v7x)
    j = pl.program_id(1)          # k-tile index      ("arbitrary" reduction)
    nb = pl.num_programs(0)
    nk = pl.num_programs(1)

    @pl.when(j == 0)
    def _init():
        acc_ref[...] = jnp.zeros_like(acc_ref)

    # bf16 math stays packed on v6e/v7x; f32 path is identical to before.
    neg = score_ref[...].astype(compute_dtype)            # (tb, tk, Dl)
    posm = posm_ref[...].astype(compute_dtype)             # (tb, 1, Dl)
    # Implicit sublane broadcast of the 1-sublane posm row (cheap on TPU).
    hinge = jnp.maximum(posm - neg, 0.0).astype(jnp.float32)

    b_rem = B % tb
    k_rem = Ks % tk

    # Hot loop: one sublane-reduce (XLU) + one small add per step -- no full-block
    # f32 accumulator read-modify-write.
    if b_rem == 0 and k_rem == 0:
        acc_ref[...] += jnp.sum(hinge, axis=1, keepdims=True)
    else:
        conds = []
        if b_rem:
            conds.append(i == nb - 1)
        if k_rem:
            conds.append(j == nk - 1)
        is_edge = functools.reduce(jnp.logical_or, conds)

        @pl.when(jnp.logical_not(is_edge))
        def _interior():
            acc_ref[...] += jnp.sum(hinge, axis=1, keepdims=True)

        @pl.when(is_edge)
        def _edge():
            # Only edge tiles pay the iota/compare/select cost; padded (out-of-bounds)
            # garbage never reaches the accumulator.
            valid = None
            if b_rem:
                bi = i * tb + jax.lax.broadcasted_iota(jnp.int32, hinge.shape, 0)
                valid = bi < B
            if k_rem:
                ki = j * tk + jax.lax.broadcasted_iota(jnp.int32, hinge.shape, 1)
                vk = ki < Ks
                valid = vk if valid is None else jnp.logical_and(valid, vk)
            acc_ref[...] += jnp.sum(jnp.where(valid, hinge, 0.0),
                                    axis=1, keepdims=True)

    # Exclude the k == 0 column (pos vs itself): it lives in sublane 0 / lanes [0, D)
    # of the j == 0 block.  Subtracting the exact same f32 values that were just added
    # avoids both hot-loop masking and the old cancellation-prone global constant.
    @pl.when(j == 0)
    def _exclude_pos():
        pos_row = hinge[:, 0:1, :]                                     # (tb, 1, Dl)
        lane = jax.lax.broadcasted_iota(jnp.int32, pos_row.shape, 2)
        keep = lane < d_orig
        if b_rem:
            bi = i * tb + jax.lax.broadcasted_iota(jnp.int32, pos_row.shape, 0)
            keep = jnp.logical_and(keep, bi < B)
        acc_ref[...] -= jnp.where(keep, pos_row, 0.0)

    @pl.when(j == nk - 1)
    def _finalize():
        # Single cross-lane/XLU reduction per B-tile, outside the hot loop.
        out_ref[...] = jnp.broadcast_to(jnp.sum(acc_ref[...]), out_ref.shape)


def _has_native_bf16_vpu():
    try:
        kind = jax.devices()[0].device_kind.lower()
    except Exception:
        return False
    return ("v6" in kind) or ("v7" in kind)


def _choose_tiles(B, Ks, Dl, score_dtype, compute_dtype):
    """Pick (tb, tk).  ~4 MiB score blocks (by input itemsize); keep the total of
    2x score block + 2x posm block (sublane-padded) + acc scratch under ~13 MiB so the
    default scoped VMEM limit (16 MiB on v5e, 32 MiB on v6e/v7x) is never exceeded."""
    isz = jnp.dtype(score_dtype).itemsize
    csz = jnp.dtype(compute_dtype).itemsize
    block_target = 4 * 1024 * 1024
    vmem_budget = 13 * 1024 * 1024

    # --- K tile: full extent if it fits, else a multiple of 8 (prefer one dividing Ks
    # so no K-edge masking survives). ---
    if Ks <= 8 or Ks * Dl * isz <= block_target:
        tk = Ks
    else:
        tk_max = max(8, (block_target // (Dl * isz)) // 8 * 8)
        tk_max = min(tk_max, (Ks // 8) * 8)
        tk = tk_max
        cand = tk_max
        while cand >= max(8, tk_max // 2):
            if Ks % cand == 0:
                tk = cand
                break
            cand -= 8

    # --- B tile from the VMEM budget (posm/acc are sublane-padded to 8). ---
    per_tb = 2 * tk * Dl * isz + 2 * 8 * Dl * csz + 8 * Dl * 4
    tb = max(1, min(B, vmem_budget // per_tb))
    if B >= 2:
        # Guarantee >= 2 B-tiles so the "parallel" axis spans both v7x TensorCores
        # (no-op cost on single-TC v5e/v6e).
        tb = min(tb, -(-B // 2))
    return tb, tk


def special_loss_transe(score, margin=1.0, re_scale=1.0, reduction="mean"):
    """score: [B, 1 + N, D] (f32 or bf16) -> scalar f32 loss.

    Matches nn.MarginRankingLoss(margin, reduction)(score[:, :1], score[:, 1:], -1) * re_scale.
    """
    # TODO(synk): reduction='none' (per-element loss tensor) is not implemented; only
    # 'mean' (module default) and 'sum' are supported.
    B, K, D = score.shape
    N = K - 1

    # Lane-densify: fold r consecutive k-rows onto the lane axis so the last dim is a
    # multiple of 128.  The reshape of a contiguous row-major tensor is free (no HBM copy).
    if D % 128 == 0:
        r = 1
    else:
        r = 128 // math.gcd(D, 128)
        if r > 1 and K % r != 0:
            r = 1                       # fall back to the natural layout
    Ks, Dl = K // r, r * D
    score_r = score.reshape(B, Ks, Dl)

    compute_dtype = jnp.float32
    if score.dtype == jnp.bfloat16 and _has_native_bf16_vpu():
        compute_dtype = jnp.bfloat16    # packed bf16 VPU math on v6e/v7x

    # Tiny side input: pos + margin, tiled r times along the lane axis -> (B, 1, Dl).
    posm = score[:, 0, :].astype(jnp.float32) + jnp.float32(margin)
    posm_row = jnp.tile(posm[:, None, :], (1, 1, r)).astype(compute_dtype)

    tb, tk = _choose_tiles(B, Ks, Dl, score.dtype, compute_dtype)
    nb = pl.cdiv(B, tb)
    nk = pl.cdiv(Ks, tk)

    kernel = functools.partial(
        _transe_hinge_kernel, compute_dtype=compute_dtype,
        d_orig=D, B=B, Ks=Ks, tb=tb, tk=tk)

    cost = pl.CostEstimate(
        flops=3 * B * K * D,
        transcendentals=0,
        bytes_accessed=(score_r.size * jnp.dtype(score_r.dtype).itemsize
                        + posm_row.size * jnp.dtype(posm_row.dtype).itemsize
                        + nb * 8 * 128 * 4))

    partials = pl.pallas_call(
        kernel,
        out_shape=jax.ShapeDtypeStruct((nb, 8, 128), jnp.float32),
        grid_spec=pltpu.PrefetchScalarGridSpec(
            num_scalar_prefetch=0,
            grid=(nb, nk),
            in_specs=[
                # Big score tensor, streamed once from HBM (double-buffered by Pallas).
                pl.BlockSpec((tb, tk, Dl), lambda i, j: (i, j, 0)),
                # Tiny pos+margin row, fetched once per B-tile (index constant over j).
                pl.BlockSpec((tb, 1, Dl), lambda i, j: (i, 0, 0)),
            ],
            out_specs=pl.BlockSpec((1, 8, 128), lambda i, j: (i, 0, 0)),
            scratch_shapes=[pltpu.VMEM((tb, 1, Dl), jnp.float32)],
        ),
        compiler_params=pltpu.CompilerParams(
            dimension_semantics=("parallel", "arbitrary")),
        cost_estimate=cost,
    )(score_r, posm_row)

    total = jnp.sum(partials[:, 0, 0])
    if reduction == "mean":
        scale = float(re_scale) / float(B * N * D)
    else:  # 'sum'
        scale = float(re_scale)
    return (total * scale).astype(jnp.float32)


def _reference(score, margin=1.0, re_scale=1.0):
    s = score.astype(jnp.float32)
    hinge = jnp.maximum(s[:, :1] - s[:, 1:] + margin, 0.0)
    return jnp.mean(hinge) * re_scale


if __name__ == "__main__":
    # Module hyper-parameters (deterministic, in-script; no checkpoint load).
    MARGIN = 1.0
    RE_SCALE = 0.5

    # score: [batch=2, 1 + nega_sample_num=7, embedding_dim=32]
    key = jax.random.PRNGKey(0)
    score = jax.random.normal(key, (2, 8, 32), dtype=jnp.float32)

    loss = special_loss_transe(score, margin=MARGIN, re_scale=RE_SCALE, reduction="mean")
    loss = jax.block_until_ready(loss)

    ref = jax.block_until_ready(_reference(score, margin=MARGIN, re_scale=RE_SCALE))
    assert jnp.allclose(loss, ref, rtol=1e-5, atol=1e-6), (loss, ref)

    print("KERNEL_OK")
</pallas_src>

<mosaic_0001>
module attributes {stable_mosaic.version = 11 : i64} {
  func.func @_transe_hinge_kernel(%arg0: i32, %arg1: i32, %arg2: memref<1x2x128xf32, #tpu.memory_space<vmem>>, %arg3: memref<1x1x128xf32, #tpu.memory_space<vmem>>, %arg4: memref<1x8x128xf32, #tpu.memory_space<vmem>>, %arg5: memref<1x1x128xf32, #tpu.memory_space<vmem>>) attributes {dimension_semantics = [#tpu.dimension_semantics<parallel>, #tpu.dimension_semantics<arbitrary>], iteration_bounds = array<i64: 2, 1>, scalar_prefetch = 0 : i64, scratch_operands = 1 : i64, tpu.core_type = #tpu.core_type<tc>, window_params = [{transform_indices = @transform_0, window_bounds = array<i64: 1, 2, 128>}, {transform_indices = @transform_1, window_bounds = array<i64: 1, 1, 128>}, {transform_indices = @transform_2, window_bounds = array<i64: 1, 8, 128>}]} {
    %c0_i32 = arith.constant 0 : i32
    %0 = arith.cmpi eq, %arg1, %c0_i32 : i32
    %1 = arith.extui %0 : i1 to i32
    %c0_i32_0 = arith.constant 0 : i32
    %2 = arith.cmpi ne, %1, %c0_i32_0 : i32
    scf.if %2 {
      %cst_17 = arith.constant 0.000000e+00 : f32
      %20 = vector.broadcast %cst_17 : f32 to vector<1x1x128xf32>
      %c0_18 = arith.constant 0 : index
      %c0_19 = arith.constant 0 : index
      %c0_20 = arith.constant 0 : index
      %21 = vector.load %arg5[%c0_18, %c0_19, %c0_20] : memref<1x1x128xf32, #tpu.memory_space<vmem>>, vector<1x1x128xf32>
      tpu.vector_store %arg5[%c0_18, %c0_19, %c0_20], %20 {strides = array<i32>} : memref<1x1x128xf32, #tpu.memory_space<vmem>>, vector<1x1x128xf32>,
    } else {
    }
    %c0 = arith.constant 0 : index
    %c0_1 = arith.constant 0 : index
    %c0_2 = arith.constant 0 : index
    %3 = vector.load %arg2[%c0, %c0_1, %c0_2] : memref<1x2x128xf32, #tpu.memory_space<vmem>>, vector<1x2x128xf32>
    %c0_3 = arith.constant 0 : index
    %c0_4 = arith.constant 0 : index
    %c0_5 = arith.constant 0 : index
    %4 = vector.load %arg3[%c0_3, %c0_4, %c0_5] : memref<1x1x128xf32, #tpu.memory_space<vmem>>, vector<1x1x128xf32>
    %5 = vector.broadcast %4 : vector<1x1x128xf32> to vector<1x2x128xf32>
    %6 = arith.subf %5, %3 : vector<1x2x128xf32>
    %cst = arith.constant 0.000000e+00 : f32
    %7 = vector.broadcast %cst : f32 to vector<1x2x128xf32>
    %8 = arith.maximumf %6, %7 : vector<1x2x128xf32>
    %c0_6 = arith.constant 0 : index
    %c0_7 = arith.constant 0 : index
    %c0_8 = arith.constant 0 : index
    %9 = vector.load %arg5[%c0_6, %c0_7, %c0_8] : memref<1x1x128xf32, #tpu.memory_space<vmem>>, vector<1x1x128xf32>
    %cst_9 = arith.constant dense<0.000000e+00> : vector<1x128xf32>
    %10 = vector.multi_reduction <add>, %8, %cst_9 [1] : vector<1x2x128xf32> to vector<1x128xf32>
    %11 = vector.shape_cast %10 : vector<1x128xf32> to vector<1x1x128xf32>
    %12 = arith.addf %9, %11 : vector<1x1x128xf32>
    %c0_10 = arith.constant 0 : index
    %c0_11 = arith.constant 0 : index
    %c0_12 = arith.constant 0 : index
    %13 = vector.load %arg5[%c0_10, %c0_11, %c0_12] : memref<1x1x128xf32, #tpu.memory_space<vmem>>, vector<1x1x128xf32>
    tpu.vector_store %arg5[%c0_10, %c0_11, %c0_12], %12 {strides = array<i32>} : memref<1x1x128xf32, #tpu.memory_space<vmem>>, vector<1x1x128xf32>,
    %c0_i32_13 = arith.constant 0 : i32
    %14 = arith.cmpi eq, %arg1, %c0_i32_13 : i32
    %15 = arith.extui %14 : i1 to i32
    %c0_i32_14 = arith.constant 0 : i32
    %16 = arith.cmpi ne, %15, %c0_i32_14 : i32
    scf.if %16 {
      %20 = vector.extract_strided_slice %8 {offsets = [0, 0, 0], sizes = [1, 1, 128], strides = [1, 1, 1]} : vector<1x2x128xf32> to vector<1x1x128xf32>
      %21 = tpu.iota {dimensions = array<i32: 2>} : vector<1x1x128xi32>
      %c32_i32 = arith.constant 32 : i32
      %22 = vector.broadcast %c32_i32 : i32 to vector<1x1x128xi32>
      %23 = arith.cmpi slt, %21, %22 : vector<1x1x128xi32>
      %c0_17 = arith.constant 0 : index
      %c0_18 = arith.constant 0 : index
      %c0_19 = arith.constant 0 : index
      %24 = vector.load %arg5[%c0_17, %c0_18, %c0_19] : memref<1x1x128xf32, #tpu.memory_space<vmem>>, vector<1x1x128xf32>
      %cst_20 = arith.constant 0.000000e+00 : f32
      %25 = vector.broadcast %cst_20 : f32 to vector<1x1x128xf32>
      %26 = arith.select %23, %20, %25 : vector<1x1x128xi1>, vector<1x1x128xf32>
      %27 = arith.subf %24, %26 : vector<1x1x128xf32>
      %c0_21 = arith.constant 0 : index
      %c0_22 = arith.constant 0 : index
      %c0_23 = arith.constant 0 : index
      %28 = vector.load %arg5[%c0_21, %c0_22, %c0_23] : memref<1x1x128xf32, #tpu.memory_space<vmem>>, vector<1x1x128xf32>
      tpu.vector_store %arg5[%c0_21, %c0_22, %c0_23], %27 {strides = array<i32>} : memref<1x1x128xf32, #tpu.memory_space<vmem>>, vector<1x1x128xf32>,
    } else {
    }
    %c0_i32_15 = arith.constant 0 : i32
    %17 = arith.cmpi eq, %arg1, %c0_i32_15 : i32
    %18 = arith.extui %17 : i1 to i32
    %c0_i32_16 = arith.constant 0 : i32
    %19 = arith.cmpi ne, %18, %c0_i32_16 : i32
    scf.if %19 {
      %c0_17 = arith.constant 0 : index
      %c0_18 = arith.constant 0 : index
      %c0_19 = arith.constant 0 : index
      %20 = vector.load %arg5[%c0_17, %c0_18, %c0_19] : memref<1x1x128xf32, #tpu.memory_space<vmem>>, vector<1x1x128xf32>
      %21 = vector.shape_cast %20 : vector<1x1x128xf32> to vector<1x1x1x128xf32>
      %cst_20 = arith.constant dense<0.000000e+00> : vector<1xf32>
      %22 = vector.multi_reduction <add>, %21, %cst_20 [1, 2, 3] : vector<1x1x1x128xf32> to vector<1xf32>
      %23 = vector.shape_cast %22 : vector<1xf32> to vector<1x1x1x1xf32>
      %24 = vector.extract %23[0, 0, 0, 0] : f32 from vector<1x1x1x1xf32>
      %25 = vector.broadcast %24 : f32 to vector<1x8x128xf32>
      %c0_21 = arith.constant 0 : index
      %c0_22 = arith.constant 0 : index
      %c0_23 = arith.constant 0 : index
      %26 = vector.load %arg4[%c0_21, %c0_22, %c0_23] : memref<1x8x128xf32, #tpu.memory_space<vmem>>, vector<1x8x128xf32>
      tpu.vector_store %arg4[%c0_21, %c0_22, %c0_23], %25 {strides = array<i32>} : memref<1x8x128xf32, #tpu.memory_space<vmem>>, vector<1x8x128xf32>,
    } else {
    }
    return
  }
  func.func @transform_0(%arg0: i32, %arg1: i32) -> (i32, i32, i32) {
    %c0_i32 = arith.constant 0 : i32
    %c0_i32_0 = arith.constant 0 : i32
    return %arg0, %arg1, %c0_i32 : i32, i32, i32
  }
  func.func @transform_1(%arg0: i32, %arg1: i32) -> (i32, i32, i32) {
    %c0_i32 = arith.constant 0 : i32
    %c0_i32_0 = arith.constant 0 : i32
    %c0_i32_1 = arith.constant 0 : i32
    return %arg0, %c0_i32, %c0_i32_0 : i32, i32, i32
  }
  func.func @transform_2(%arg0: i32, %arg1: i32) -> (i32, i32, i32) {
    %c0_i32 = arith.constant 0 : i32
    %c0_i32_0 = arith.constant 0 : i32
    %c0_i32_1 = arith.constant 0 : i32
    return %arg0, %c0_i32, %c0_i32_0 : i32, i32, i32
  }
}

</mosaic_0001>

<llo_original>
// kernel: tpu_custom_call.1
$region0: #{tpu_custom_call.1}
  #allocation0 [shape = 'u32[]', space=smem, size = 0x4, offset = 0x4, fixed_abs, tag = 'smem constant byte address 0x4 - core index']
  #allocation1 [shape = 'u32[72,128]{1,0:T(1,128)}', space=vmem, size = 0x9000, scoped, tag = 'internal scratch']
  #allocation2 [shape = 'f32[1,1,128]{2,1,0:T(1,128)}', space=vmem, size = 0x200, scoped, tag = 'scratch operand']
  %s0 = inlined_call_operand.hbm [shape: f32[2,2,128], index: 0, kind: input, shape index: {}]
  %s1 = inlined_call_operand.hbm [shape: f32[2,1,128], index: 1, kind: input, shape index: {}]
  %s2 = inlined_call_operand.hbm [shape: f32[2,8,128], index: 2, kind: output, shape index: {}]
  %s3 = sld [smem:[#allocation0]]
  $region57: #{tpu_custom_call.1} parent=0
    _
  %s5 = ssub.s32 1, %s3
  %s6 = scalar_select 0, %s5, %s3
  $region1: #{tpu_custom_call.1} parent=0
    #allocation3 [shape = 'u8[2048]{0}', space=vmem, size = 0x800, scoped, tag = 'input window, operand 0']
    #allocation4 [shape = 's32[2]{0}', space=sflag, size = 0x8, scoped, tag = 'scoped memory for tpu_custom_call.1']
    #allocation5 [shape = 's32[2]{0}', space=sflag, size = 0x8, scoped, tag = 'scoped memory for tpu_custom_call.1']
    #allocation6 [shape = 'u8[1024]{0}', space=vmem, size = 0x400, scoped, tag = 'input window, operand 1']
    #allocation7 [shape = 's32[2]{0}', space=sflag, size = 0x8, scoped, tag = 'scoped memory for tpu_custom_call.1']
    #allocation8 [shape = 'u8[8192]{0}', space=vmem, size = 0x2000, scoped, tag = 'output window, operand 0']
    %7 = vsyncpa [#allocation4], 0
    %s8 = scalar_lea.sflag [#allocation4], 1
    %9 = vsyncpa %s8, 0
    %10 = vsyncpa [#allocation7], 0
    %s11 = scalar_lea.sflag [#allocation7], 1
    %12 = vsyncpa %s11, 0
    %13 = vsyncpa [#allocation5], 0
    %s14 = scalar_lea.sflag [#allocation5], 1
    %15 = vsyncpa %s14, 0
    loop: start=0, step=1, limit=4
    $region2: #{tpu_custom_call.1} parent=1 // loop_pre_header
      _
    $region3: #{tpu_custom_call.1} parent=1 // loop_header
      %s17 = sphi 0, %s21
      %p18 = scmp.ge.s32.totalorder %s17, 4
      %s24 = sphi 0, %s36
      %s25 = sphi 0, %s32
      %s26 = sphi 0, %s24
      %s27 = sphi 0, %s25
      %s28 = sphi 0, %s26
      %s29 = sphi 0, %s27
      %s41 = sphi 0, %s43
      %s44 = sphi 0, %s41
      %s45 = sphi 0, %s44
      %s61 = sphi 0, %s45
      %s67 = sphi 0, %s69
      %s70 = sphi 0, %s67
      %s71 = sphi 0, %s70
      %s87 = sphi 0, %s71
      %s93 = sphi 0, %s95
      %s96 = sphi 0, %s93
      %s97 = sphi 0, %s96
      %s113 = sphi 0, %s97
    $region4: #{tpu_custom_call.1} parent=1 // loop_header_branch
      %20 = sbr.rel (%p18) target = $region8
    $region5: #{tpu_custom_call.1} parent=1 // loop_body
      %s22 = ssub.s32 %s17, 1
      %s23 = ssub.s32 %s17, 2
      %s30 = sadd.s32 1, %s25
      %p31 = scmp.ge.s32.totalorder %s30, 1
      %s32 = scalar_select %p31, 0, %s30
      %s33 = sadd.s32 1, %s24
      %s34 = scalar_select %p31, %s33, %s24
      %p35 = scmp.ge.s32.totalorder %s34, 2
      %s36 = scalar_select %p35, 0, %s34
      %s37 = ssub.s32 %s24, %s36
      %s38 = ssub.s32 %s25, %s32
      %s39 = sor.u32 %s37, %s38
      %p40 = scmp.eq.s32.totalorder %s39, 0
      %s42 = sadd.s32 %s41, 1
      %s43 = scalar_select %p40, %s41, %s42
      %p46 = pneg %p40
      %p47 = scmp.eq.s32.totalorder %s17, 1
      %p48 = por %p46, %p47
      %p49 = scmp.ne.s32.totalorder %s41, %s44
      %p50 = scmp.eq.s32.totalorder %s17, 0
      %p51 = por %p49, %p50
      %p52 = scmp.ne.s32.totalorder %s41, %s44
      %p53 = scmp.eq.s32.totalorder %s22, 1
      %p54 = por %p52, %p53
      %p55 = scmp.ne.s32.totalorder %s44, %s45
      %p56 = scmp.eq.s32.totalorder %s22, 0
      %p57 = por %p55, %p56
      %p58 = scmp.ne.s32.totalorder %s44, %s45
      %p59 = scmp.eq.s32.totalorder %s23, 1
      %p60 = por %p58, %p59
      %p62 = scmp.ne.s32.totalorder %s45, %s61
      %p63 = scmp.eq.s32.totalorder %s23, 0
      %p64 = por %p62, %p63
      %s65 = ssub.s32 %s24, %s36
      %p66 = scmp.eq.s32.totalorder %s65, 0
      %s68 = sadd.s32 %s67, 1
      %s69 = scalar_select %p66, %s67, %s68
      %p72 = pneg %p66
      %p73 = scmp.eq.s32.totalorder %s17, 1
      %p74 = por %p72, %p73
      %p75 = scmp.ne.s32.totalorder %s67, %s70
      %p76 = scmp.eq.s32.totalorder %s17, 0
      %p77 = por %p75, %p76
      %p78 = scmp.ne.s32.totalorder %s67, %s70
      %p79 = scmp.eq.s32.totalorder %s22, 1
      %p80 = por %p78, %p79
      %p81 = scmp.ne.s32.totalorder %s70, %s71
      %p82 = scmp.eq.s32.totalorder %s22, 0
      %p83 = por %p81, %p82
      %p84 = scmp.ne.s32.totalorder %s70, %s71
      %p85 = scmp.eq.s32.totalorder %s23, 1
      %p86 = por %p84, %p85
      %p88 = scmp.ne.s32.totalorder %s71, %s87
      %p89 = scmp.eq.s32.totalorder %s23, 0
      %p90 = por %p88, %p89
      %s91 = ssub.s32 %s24, %s36
      %p92 = scmp.eq.s32.totalorder %s91, 0
      %s94 = sadd.s32 %s93, 1
      %s95 = scalar_select %p92, %s93, %s94
      %p98 = pneg %p92
      %p99 = scmp.eq.s32.totalorder %s17, 1
      %p100 = por %p98, %p99
      %p101 = scmp.ne.s32.totalorder %s93, %s96
      %p102 = scmp.eq.s32.totalorder %s17, 0
      %p103 = por %p101, %p102
      %p104 = scmp.ne.s32.totalorder %s93, %s96
      %p105 = scmp.eq.s32.totalorder %s22, 1
      %p106 = por %p104, %p105
      %p107 = scmp.ne.s32.totalorder %s96, %s97
      %p108 = scmp.eq.s32.totalorder %s22, 0
      %p109 = por %p107, %p108
      %p110 = scmp.ne.s32.totalorder %s96, %s97
      %p111 = scmp.eq.s32.totalorder %s23, 1
      %p112 = por %p110, %p111
      %p114 = scmp.ne.s32.totalorder %s97, %s113
      %p115 = scmp.eq.s32.totalorder %s23, 0
      %p116 = por %p114, %p115
      %p117 = scmp.le.s32.totalorder 1, %s17
      %p118 = scmp.lt.s32.totalorder %s17, 3
      %p119 = pnand %p117, %p118
      %p120 = pneg %p119
      // Predicated region
      $region9: #{tpu_custom_call.1} parent=5 // pred_check
        _
      $region10: #{tpu_custom_call.1} parent=5 // pred_check_branch
        %122 = sbr.rel (%p119) target = $region12
      $region11: #{tpu_custom_call.1} parent=5 // pred_region
        %s123 = ssub.s32 %s17, 1
      $region12: #{tpu_custom_call.1} parent=5 // pred_fallthru
        _
      %p124 = scmp.lt.s32.totalorder %s17, 2
      // Predicated region
      $region13: #{tpu_custom_call.1} parent=5 // pred_check
        %p125 = pneg %p124
      $region14: #{tpu_custom_call.1} parent=5 // pred_check_branch
        %127 = sbr.rel (%p125) target = $region16
      $region15: #{tpu_custom_call.1} parent=5 // pred_region
        // Predicated region
        $region17: #{tpu_custom_call.1} parent=15 // pred_check
          %p128 = pneg %p51
        $region18: #{tpu_custom_call.1} parent=15 // pred_check_branch
          %130 = sbr.rel (%p128) target = $region20
        $region19: #{tpu_custom_call.1} parent=15 // pred_region
          %s131 = sand.u32 %s41, 1
          %s132 = scalar_lea.sflag [#allocation4], %s131
          %s133 = sand.u32 %s41, 1
          %s134 = smul.addr %s133, 2
          %s135 = scalar_lea.vmem [#allocation3], %s134
          %137 = vsyncadd %s132, 0
          %s138 = sadd.s32 %s25, %s24
          %s139 = smul.addr %s138, 2
          %s140 = scalar_lea.hbm %s0, %s139
          %s142 = sshll.u32 %s140, 4
          %s143 = int_to_ptr.hbm [resolvable:$true] %s142
          %s144 = sshll.u32 %s135, 4
          %s145 = int_to_ptr.vmem [resolvable:$true] %s144
          %147 = dma.hbm_to_vmem [thread:$0]  %s143, 32, %s145, %s132
        $region20: #{tpu_custom_call.1} parent=15 // pred_fallthru
          _
        // Predicated region
        $region21: #{tpu_custom_call.1} parent=15 // pred_check
          %p148 = pneg %p77
        $region22: #{tpu_custom_call.1} parent=15 // pred_check_branch
          %150 = sbr.rel (%p148) target = $region24
        $region23: #{tpu_custom_call.1} parent=15 // pred_region
          %s151 = sand.u32 %s67, 1
          %s152 = scalar_lea.sflag [#allocation7], %s151
          %s153 = sand.u32 %s67, 1
          %s154 = scalar_lea.vmem [#allocation6], %s153
          %156 = vsyncadd %s152, 0
          %s157 = scalar_lea.hbm %s1, %s24
          %s159 = sshll.u32 %s157, 4
          %s160 = int_to_ptr.hbm [resolvable:$true] %s159
          %s161 = sshll.u32 %s154, 4
          %s162 = int_to_ptr.vmem [resolvable:$true] %s161
          %164 = dma.hbm_to_vmem [thread:$0]  %s160, 16, %s162, %s152
        $region24: #{tpu_custom_call.1} parent=15 // pred_fallthru
          _
      $region16: #{tpu_custom_call.1} parent=5 // pred_fallthru
        _
      %p165 = scmp.le.s32.totalorder 1, %s17
      %p166 = scmp.lt.s32.totalorder %s17, 3
      %p167 = pnand %p165, %p166
      %p168 = pneg %p167
      // Predicated region
      $region25: #{tpu_custom_call.1} parent=5 // pred_check
        _
      $region26: #{tpu_custom_call.1} parent=5 // pred_check_branch
        %170 = sbr.rel (%p167) target = $region28
      $region27: #{tpu_custom_call.1} parent=5 // pred_region
        %s171 = ssub.s32 %s17, 1
        %s172 = sand.u32 %s44, 1
        %s173 = scalar_lea.sflag [#allocation4], %s172
        %s174 = sand.u32 %s44, 1
        %s175 = smul.addr %s174, 2
        %s176 = scalar_lea.vmem [#allocation3], %s175
        // Predicated region
        $region29: #{tpu_custom_call.1} parent=27 // pred_check
          %p177 = pneg %p57
        $region30: #{tpu_custom_call.1} parent=27 // pred_check_branch
          %179 = sbr.rel (%p177) target = $region32
        $region31: #{tpu_custom_call.1} parent=27 // pred_region
          %181 = dma.done %s173, 32
        $region32: #{tpu_custom_call.1} parent=27 // pred_fallthru
          _
        %s182 = sand.u32 %s70, 1
        %s183 = scalar_lea.sflag [#allocation7], %s182
        %s184 = sand.u32 %s70, 1
        %s185 = scalar_lea.vmem [#allocation6], %s184
        // Predicated region
        $region33: #{tpu_custom_call.1} parent=27 // pred_check
          %p186 = pneg %p83
        $region34: #{tpu_custom_call.1} parent=27 // pred_check_branch
          %188 = sbr.rel (%p186) target = $region36
        $region35: #{tpu_custom_call.1} parent=27 // pred_region
          %190 = dma.done %s183, 16
        $region36: #{tpu_custom_call.1} parent=27 // pred_fallthru
          _
        %s191 = sand.u32 %s44, 1
        %s192 = scalar_lea.sflag [#allocation4], %s191
        %s193 = sand.u32 %s44, 1
        %s194 = smul.addr %s193, 2
        %s195 = scalar_lea.vmem [#allocation3], %s194
        %p196 = pneg %p57
        %p197 = pneg %p54
        %s198 = sand.u32 %s70, 1
        %s199 = scalar_lea.sflag [#allocation7], %s198
        %s200 = sand.u32 %s70, 1
        %s201 = scalar_lea.vmem [#allocation6], %s200
        %p202 = pneg %p83
        %p203 = pneg %p80
        %p204 = pneg %p109
        %p205 = pneg %p106
        %s206 = sand.u32 %s96, 1
        %s207 = scalar_lea.sflag [#allocation5], %s206
        %s208 = sand.u32 %s96, 1
        %s209 = smul.addr %s208, 8
        %s210 = scalar_lea.vmem [#allocation8], %s209
        %p211 = scmp.eq.s32.totalorder %s27, 0
        // Predicated region
        $region37: #{tpu_custom_call.1} parent=27 // pred_check
          %p212 = pneg %p211
        $region38: #{tpu_custom_call.1} parent=27 // pred_check_branch
          %214 = sbr.rel (%p212) target = $region40
        $region39: #{tpu_custom_call.1} parent=27 // pred_region
          %215 = vst [vmem:[#allocation2] sm:$0x1] 0.0
        $region40: #{tpu_custom_call.1} parent=27 // pred_fallthru
          _
        %v216 = vld [vmem:[%s176] sm:$0x3]
        %v217 = vld [vmem:[%s185] sm:$0x1]
        %v219 = vperm.slane %v217, 0
        %v221 = vsub.f32 %v219, %v216
        %v222 = vmax.f32 %v221, 0.0
        %v223 = vld [vmem:[#allocation2] sm:$0x1]
        %vm224 = vcmask 1041408
        %v225 = vsel %vm224, %v222, 0.0
        %v226 = vrot.slane %v225, 4
        %v227 = vadd.f32 %v225, %v226
        %v228 = vrot.slane %v227, 2
        %v229 = vadd.f32 %v227, %v228
        %v230 = vrot.slane %v229, 1
        %v231 = vadd.f32 %v229, %v230
        %v232 = vadd.f32 %v223, %v231
        %233 = vst [vmem:[#allocation2] sm:$0x1] %v232
        // Predicated region
        $region41: #{tpu_custom_call.1} parent=27 // pred_check
          %p234 = pneg %p211
        $region42: #{tpu_custom_call.1} parent=27 // pred_check_branch
          %236 = sbr.rel (%p234) target = $region44
        $region43: #{tpu_custom_call.1} parent=27 // pred_region
          %v237 = vlaneseq
          %v238 = vand.u32 %v237, 127
          %vm239 = vcmp.lt.s32.totalorder %v238, 32
          %v240 = vld [vmem:[#allocation2] sm:$0x1]
          %v241 = vsel %vm239, %v222, 0.0
          %v242 = vsub.f32 %v240, %v241
          %243 = vst [vmem:[#allocation2] sm:$0x1] %v242
          %v244 = vld [vmem:[#allocation2] sm:$0x1]
          %vm245 = vcmask 1040384
          %v246 = vsel %vm245, %v244, 0.0
          %247 = vadd.xlane.f32.xlu0 %v246
          %v248 = vpop.xlane.xlu0 %247
          %v249 = vrot.slane %v248, 4
          %v250 = vadd.f32 %v248, %v249
          %v251 = vrot.slane %v250, 2
          %v252 = vadd.f32 %v250, %v251
          %v253 = vrot.slane %v252, 1
          %v254 = vadd.f32 %v252, %v253
          %s255 = vtos %v254
          %v256 = vstv %s255
          %257 = vst [vmem:[%s210] sm:$0xff] %v256
        $region44: #{tpu_custom_call.1} parent=27 // pred_fallthru
          _
        %s258 = sand.u32 %s96, 1
        %s259 = scalar_lea.sflag [#allocation5], %s258
        %s260 = sand.u32 %s96, 1
        %s261 = smul.addr %s260, 8
        %s262 = scalar_lea.vmem [#allocation8], %s261
        // Predicated region
        $region45: #{tpu_custom_call.1} parent=27 // pred_check
          %p263 = pneg %p106
        $region46: #{tpu_custom_call.1} parent=27 // pred_check_branch
          %265 = sbr.rel (%p263) target = $region48
        $region47: #{tpu_custom_call.1} parent=27 // pred_region
          %267 = vsyncadd %s259, 0
          %s268 = smul.addr %s26, 8
          %s269 = scalar_lea.hbm %s2, %s268
          %s271 = sshll.u32 %s262, 4
          %s272 = int_to_ptr.vmem [resolvable:$true] %s271
          %s273 = sshll.u32 %s269, 4
          %s274 = int_to_ptr.hbm [resolvable:$true] %s273
          %276 = dma.vmem_to_hbm [thread:$0]  %s272, 128, %s274, %s259
        $region48: #{tpu_custom_call.1} parent=27 // pred_fallthru
          _
      $region28: #{tpu_custom_call.1} parent=5 // pred_fallthru
        _
      %p277 = scmp.le.s32.totalorder 2, %s17
      // Predicated region
      $region49: #{tpu_custom_call.1} parent=5 // pred_check
        %p278 = pneg %p277
      $region50: #{tpu_custom_call.1} parent=5 // pred_check_branch
        %280 = sbr.rel (%p278) target = $region52
      $region51: #{tpu_custom_call.1} parent=5 // pred_region
        %s281 = ssub.s32 %s17, 2
        // Predicated region
        $region53: #{tpu_custom_call.1} parent=51 // pred_check
          %p282 = pneg %p112
        $region54: #{tpu_custom_call.1} parent=51 // pred_check_branch
          %284 = sbr.rel (%p282) target = $region56
        $region55: #{tpu_custom_call.1} parent=51 // pred_region
          %s285 = sand.u32 %s97, 1
          %s286 = scalar_lea.sflag [#allocation5], %s285
          %s287 = sand.u32 %s97, 1
          %s288 = smul.addr %s287, 8
          %s289 = scalar_lea.vmem [#allocation8], %s288
          %291 = dma.done %s286, 128
        $region56: #{tpu_custom_call.1} parent=51 // pred_fallthru
          _
      $region52: #{tpu_custom_call.1} parent=5 // pred_fallthru
        _
    $region6: #{tpu_custom_call.1} parent=1 // loop_footer
      %s21 = sadd.s32 1, %s17
    $region7: #{tpu_custom_call.1} parent=1 // loop_footer_branch
      %16 = sbr.rel target = $region3
    $region8: #{tpu_custom_call.1} parent=1 // loop_exit
      _
    %292 = vsyncpa [#allocation4], 1
    %s293 = scalar_lea.sflag [#allocation4], 1
    %294 = vsyncpa %s293, 1
    %295 = vsyncpa [#allocation7], 1
    %s296 = scalar_lea.sflag [#allocation7], 1
    %297 = vsyncpa %s296, 1
    %298 = vsyncpa [#allocation5], 1
    %s299 = scalar_lea.sflag [#allocation5], 1
    %300 = vsyncpa %s299, 1

</llo_original>
